<compile_context>
chip_gen: v5e
topology: v5e:2x2
jax: 0.10.0
libtpu: 0.0.40
codegen_flags: <defaults>
</compile_context>

<pallas_src>
import jax
import jax.numpy as jnp
from jax.experimental import pallas as pl
from jax.experimental.pallas import tpu as pltpu


NEG_SLOPE = 0.01          # F.leaky_relu default negative_slope
_MAX_TILE = 32768         # ~0.5 KB/element resident -> fits v7x 64 MiB VMEM
_VMEM_LIMIT = 32 * 1024 * 1024


def _leaky_relu(x):
    # slope < 1  =>  leaky_relu(x) == max(x, slope*x); 2 VPU ops, no select.
    return jnp.maximum(x, NEG_SLOPE * x)


def _round_up(x, m):
    return ((x + m - 1) // m) * m


def _choose_tile(n, tile_n):
    """Pick a lane-aligned batch tile and padded batch size."""
    tile_n = max(128, _round_up(int(tile_n), 128))   # always a multiple of 128
    tile_n = min(tile_n, _MAX_TILE)                  # v7x VMEM budget cap
    n128 = _round_up(n, 128)
    tn = min(tile_n, n128)
    # Prefer >= 2 grid steps when there is enough work, so a 2-TensorCore chip
    # can shard the batch axis; negligible cost on single-core chips.
    if n128 <= tn and n128 >= 2048:
        tn = _round_up(pl.cdiv(n128, 2), 128)
    n_pad = _round_up(n128, tn)
    return tn, n_pad


def generator_kernel(z_ref, w1_ref, b1_ref, w2_ref, b2_ref, w3_ref, b3_ref, o_ref):
    # z_ref: (2, TN)  -- batch on lanes, the 2 input features on sublanes (f32)
    z = z_ref[...]
    w1 = w1_ref[...]                                    # (H, 2) f32

    # --- lin1 (2 -> H): K=2 is far too small for the MXU; two VPU broadcast
    #     multiply-adds:  h[j, n] = w1[j,0]*z0[n] + w1[j,1]*z1[n] + b1[j]
    h = w1[:, 0:1] * z[0:1, :] + w1[:, 1:2] * z[1:2, :] + b1_ref[...]   # (H, TN) f32
    h = _leaky_relu(h)

    # --- lin2 (H -> H): bf16 x bf16 MXU matmul, f32 accumulation, lane-dense.
    h2 = jnp.dot(w2_ref[...], h.astype(jnp.bfloat16),
                 preferred_element_type=jnp.float32) + b2_ref[...]      # (H, TN) f32
    h2 = _leaky_relu(h2)

    # --- lin3 (H -> 2): small bf16 (2,H) @ (H,TN) matmul; output stays lane-dense.
    x = jnp.dot(w3_ref[...], h2.astype(jnp.bfloat16),
                preferred_element_type=jnp.float32) + b3_ref[...]       # (2, TN) f32

    # residual add (exact, f32)
    o_ref[...] = (x + z).astype(o_ref.dtype)


def generator_forward(z, params, tile_n=16384):
    """z: (N, 2) float32.  params: PyTorch-convention weights/biases.

    Transposes to the lane-dense (2, N) layout, pads N up to a multiple of the
    batch tile, runs the fused kernel over a 1-D parallel grid on the batch
    axis, and transposes/slices the result back to (N, 2).
    (If the surrounding model can keep z in (2, N) layout end-to-end, the
    wrapper-side transposes/pad can be dropped to save HBM round trips.)
    """
    n = z.shape[0]
    nh = params["w2"].shape[0]

    tn, n_pad = _choose_tile(n, tile_n)
    num_tiles = n_pad // tn

    zT = z.T                                            # (2, N)
    if n_pad != n:
        zT = jnp.pad(zT, ((0, 0), (0, n_pad - n)))      # (2, N_pad)

    w1 = params["w1"]                                   # (H, 2)  f32  (VPU path)
    b1 = params["b1"].reshape(nh, 1)                    # (H, 1)  f32
    w2 = params["w2"].astype(jnp.bfloat16)              # (H, H)  bf16 (MXU input)
    b2 = params["b2"].reshape(nh, 1)                    # (H, 1)  f32
    w3 = params["w3"].astype(jnp.bfloat16)              # (2, H)  bf16 (MXU input)
    b3 = params["b3"].reshape(2, 1)                     # (2, 1)  f32

    resident = lambda a: pl.BlockSpec(a.shape, lambda i: (0,) * a.ndim)

    outT = pl.pallas_call(
        generator_kernel,
        out_shape=jax.ShapeDtypeStruct((2, n_pad), z.dtype),
        grid=(num_tiles,),
        in_specs=[
            pl.BlockSpec((2, tn), lambda i: (0, i)),    # z^T tile (lane-dense batch)
            resident(w1), resident(b1),
            resident(w2), resident(b2),
            resident(w3), resident(b3),
        ],
        out_specs=pl.BlockSpec((2, tn), lambda i: (0, i)),
        compiler_params=pltpu.CompilerParams(
            dimension_semantics=("parallel",),
            vmem_limit_bytes=_VMEM_LIMIT,
        ),
    )(zT, w1, b1, w2, b2, w3, b3)

    return outT[:, :n].T                                # back to (N, 2)


def init_params(key, nhidden):
    """Deterministic init matching nn.Linear shapes (W: (out, in), b: (out,))."""
    k1, k2, k3, k4, k5, k6 = jax.random.split(key, 6)

    def lin(kw, kb, fan_in, fan_out):
        bound = 1.0 / jnp.sqrt(fan_in)
        w = jax.random.uniform(kw, (fan_out, fan_in), jnp.float32, -bound, bound)
        b = jax.random.uniform(kb, (fan_out,), jnp.float32, -bound, bound)
        return w, b

    w1, b1 = lin(k1, k2, 2, nhidden)
    w2, b2 = lin(k3, k4, nhidden, nhidden)
    w3, b3 = lin(k5, k6, nhidden, 2)
    return {"w1": w1, "b1": b1, "w2": w2, "b2": b2, "w3": w3, "b3": b3}


def _reference(z, p):
    # Pure-f32 reference of the PyTorch forward.
    h = jax.nn.leaky_relu(z @ p["w1"].T + p["b1"], NEG_SLOPE)
    h2 = jax.nn.leaky_relu(h @ p["w2"].T + p["b2"], NEG_SLOPE)
    x = h2 @ p["w3"].T + p["b3"]
    return x + z


if __name__ == "__main__":
    key = jax.random.PRNGKey(0)
    kz, kz2, kz3, kp = jax.random.split(key, 4)

    nhidden = 32
    params = init_params(kp, nhidden)

    # bf16 matmul inputs => loosened tolerance vs. the f32 reference
    # (bias adds, lin1, leaky_relu and the residual stay exactly f32).
    ATOL = 3e-2
    RTOL = 3e-2

    # Small check (matches the toy module usage): single padded tile.
    batch = 8
    z = jax.random.normal(kz, (batch, 2), jnp.float32)
    out = jax.block_until_ready(generator_forward(z, params))
    ref = _reference(z, params)
    assert out.shape == (batch, 2)
    assert jnp.allclose(out, ref, atol=ATOL, rtol=RTOL), "mismatch vs reference (small)"

    # Tiled check: non-multiple-of-128 batch exercises padding + multiple grid steps.
    batch2 = 300
    z2 = jax.random.normal(kz2, (batch2, 2), jnp.float32)
    out2 = jax.block_until_ready(generator_forward(z2, params, tile_n=128))
    ref2 = _reference(z2, params)
    assert out2.shape == (batch2, 2)
    assert jnp.allclose(out2, ref2, atol=ATOL, rtol=RTOL), "mismatch vs reference (tiled)"

    # Medium check: exercises the automatic >=2-tile split on the default path.
    batch3 = 2048
    z3 = jax.random.normal(kz3, (batch3, 2), jnp.float32)
    out3 = jax.block_until_ready(generator_forward(z3, params))
    ref3 = _reference(z3, params)
    assert out3.shape == (batch3, 2)
    assert jnp.allclose(out3, ref3, atol=ATOL, rtol=RTOL), "mismatch vs reference (split)"

    print("KERNEL_OK")
</pallas_src>

<mosaic_0001>
module attributes {stable_mosaic.version = 11 : i64} {
  func.func @generator_kernel(%arg0: i32, %arg1: memref<2x128xf32, #tpu.memory_space<vmem>>, %arg2: memref<32x2xf32, #tpu.memory_space<vmem>>, %arg3: memref<32x1xf32, #tpu.memory_space<vmem>>, %arg4: memref<32x32xbf16, #tpu.memory_space<vmem>>, %arg5: memref<32x1xf32, #tpu.memory_space<vmem>>, %arg6: memref<2x32xbf16, #tpu.memory_space<vmem>>, %arg7: memref<2x1xf32, #tpu.memory_space<vmem>>, %arg8: memref<2x128xf32, #tpu.memory_space<vmem>>) attributes {dimension_semantics = [#tpu.dimension_semantics<parallel>], iteration_bounds = array<i64: 1>, scalar_prefetch = 0 : i64, scratch_operands = 0 : i64, tpu.core_type = #tpu.core_type<tc>, window_params = [{transform_indices = @transform_0, window_bounds = array<i64: 2, 128>}, {pipeline_mode = #tpu.pipeline_mode<synchronous>, transform_indices = @transform_1, window_bounds = array<i64: 32, 2>}, {pipeline_mode = #tpu.pipeline_mode<synchronous>, transform_indices = @transform_2, window_bounds = array<i64: 32, 1>}, {pipeline_mode = #tpu.pipeline_mode<synchronous>, transform_indices = @transform_3, window_bounds = array<i64: 32, 32>}, {pipeline_mode = #tpu.pipeline_mode<synchronous>, transform_indices = @transform_4, window_bounds = array<i64: 32, 1>}, {pipeline_mode = #tpu.pipeline_mode<synchronous>, transform_indices = @transform_5, window_bounds = array<i64: 2, 32>}, {pipeline_mode = #tpu.pipeline_mode<synchronous>, transform_indices = @transform_6, window_bounds = array<i64: 2, 1>}, {transform_indices = @transform_7, window_bounds = array<i64: 2, 128>}]} {
    %c0 = arith.constant 0 : index
    %c0_0 = arith.constant 0 : index
    %0 = vector.load %arg1[%c0, %c0_0] : memref<2x128xf32, #tpu.memory_space<vmem>>, vector<2x128xf32>
    %c0_1 = arith.constant 0 : index
    %c0_2 = arith.constant 0 : index
    %1 = vector.load %arg2[%c0_1, %c0_2] : memref<32x2xf32, #tpu.memory_space<vmem>>, vector<32x2xf32>
    %2 = vector.extract_strided_slice %1 {offsets = [0, 0], sizes = [32, 1], strides = [1, 1]} : vector<32x2xf32> to vector<32x1xf32>
    %3 = vector.extract_strided_slice %0 {offsets = [0, 0], sizes = [1, 128], strides = [1, 1]} : vector<2x128xf32> to vector<1x128xf32>
    %4 = vector.broadcast %2 : vector<32x1xf32> to vector<32x128xf32>
    %5 = vector.broadcast %3 : vector<1x128xf32> to vector<32x128xf32>
    %6 = arith.mulf %4, %5 : vector<32x128xf32>
    %7 = vector.extract_strided_slice %1 {offsets = [0, 1], sizes = [32, 1], strides = [1, 1]} : vector<32x2xf32> to vector<32x1xf32>
    %8 = vector.extract_strided_slice %0 {offsets = [1, 0], sizes = [1, 128], strides = [1, 1]} : vector<2x128xf32> to vector<1x128xf32>
    %9 = vector.broadcast %7 : vector<32x1xf32> to vector<32x128xf32>
    %10 = vector.broadcast %8 : vector<1x128xf32> to vector<32x128xf32>
    %11 = arith.mulf %9, %10 : vector<32x128xf32>
    %12 = arith.addf %6, %11 : vector<32x128xf32>
    %c0_3 = arith.constant 0 : index
    %c0_4 = arith.constant 0 : index
    %13 = vector.load %arg3[%c0_3, %c0_4] : memref<32x1xf32, #tpu.memory_space<vmem>>, vector<32x1xf32>
    %14 = vector.broadcast %13 : vector<32x1xf32> to vector<32x128xf32>
    %15 = arith.addf %12, %14 : vector<32x128xf32>
    %cst = arith.constant 0.00999999977 : f32
    %16 = vector.broadcast %cst : f32 to vector<32x128xf32>
    %17 = arith.mulf %16, %15 : vector<32x128xf32>
    %18 = arith.maximumf %15, %17 : vector<32x128xf32>
    %c0_5 = arith.constant 0 : index
    %c0_6 = arith.constant 0 : index
    %19 = vector.load %arg4[%c0_5, %c0_6] : memref<32x32xbf16, #tpu.memory_space<vmem>>, vector<32x32xbf16>
    %20 = arith.truncf %18 : vector<32x128xf32> to vector<32x128xbf16>
    %cst_7 = arith.constant dense<0.000000e+00> : vector<32x128xf32>
    %21 = tpu.matmul %19, %20, %cst_7 {dimension_numbers = #tpu.dot_dimension_numbers<[1], [0], [0], [1], [0, 0, 1, 1], [], []>} : vector<32x32xbf16>, vector<32x128xbf16>, vector<32x128xf32> -> vector<32x128xf32>
    %c0_8 = arith.constant 0 : index
    %c0_9 = arith.constant 0 : index
    %22 = vector.load %arg5[%c0_8, %c0_9] : memref<32x1xf32, #tpu.memory_space<vmem>>, vector<32x1xf32>
    %23 = vector.broadcast %22 : vector<32x1xf32> to vector<32x128xf32>
    %24 = arith.addf %21, %23 : vector<32x128xf32>
    %cst_10 = arith.constant 0.00999999977 : f32
    %25 = vector.broadcast %cst_10 : f32 to vector<32x128xf32>
    %26 = arith.mulf %25, %24 : vector<32x128xf32>
    %27 = arith.maximumf %24, %26 : vector<32x128xf32>
    %c0_11 = arith.constant 0 : index
    %c0_12 = arith.constant 0 : index
    %28 = vector.load %arg6[%c0_11, %c0_12] : memref<2x32xbf16, #tpu.memory_space<vmem>>, vector<2x32xbf16>
    %29 = arith.truncf %27 : vector<32x128xf32> to vector<32x128xbf16>
    %cst_13 = arith.constant dense<0.000000e+00> : vector<2x128xf32>
    %30 = tpu.matmul %28, %29, %cst_13 {dimension_numbers = #tpu.dot_dimension_numbers<[1], [0], [0], [1], [0, 0, 1, 1], [], []>} : vector<2x32xbf16>, vector<32x128xbf16>, vector<2x128xf32> -> vector<2x128xf32>
    %c0_14 = arith.constant 0 : index
    %c0_15 = arith.constant 0 : index
    %31 = vector.load %arg7[%c0_14, %c0_15] : memref<2x1xf32, #tpu.memory_space<vmem>>, vector<2x1xf32>
    %32 = vector.broadcast %31 : vector<2x1xf32> to vector<2x128xf32>
    %33 = arith.addf %30, %32 : vector<2x128xf32>
    %34 = arith.addf %33, %0 : vector<2x128xf32>
    %c0_16 = arith.constant 0 : index
    %c0_17 = arith.constant 0 : index
    %35 = vector.load %arg8[%c0_16, %c0_17] : memref<2x128xf32, #tpu.memory_space<vmem>>, vector<2x128xf32>
    tpu.vector_store %arg8[%c0_16, %c0_17], %34 {strides = array<i32>} : memref<2x128xf32, #tpu.memory_space<vmem>>, vector<2x128xf32>,
    return
  }
  func.func @transform_0(%arg0: i32) -> (i32, i32) {
    %c0_i32 = arith.constant 0 : i32
    %c0_i32_0 = arith.constant 0 : i32
    return %c0_i32, %arg0 : i32, i32
  }
  func.func @transform_1(%arg0: i32) -> (i32, i32) {
    %c0_i32 = arith.constant 0 : i32
    %c0_i32_0 = arith.constant 0 : i32
    %c0_i32_1 = arith.constant 0 : i32
    return %c0_i32, %c0_i32_0 : i32, i32
  }
  func.func @transform_2(%arg0: i32) -> (i32, i32) {
    %c0_i32 = arith.constant 0 : i32
    %c0_i32_0 = arith.constant 0 : i32
    %c0_i32_1 = arith.constant 0 : i32
    return %c0_i32, %c0_i32_0 : i32, i32
  }
  func.func @transform_3(%arg0: i32) -> (i32, i32) {
    %c0_i32 = arith.constant 0 : i32
    %c0_i32_0 = arith.constant 0 : i32
    %c0_i32_1 = arith.constant 0 : i32
    return %c0_i32, %c0_i32_0 : i32, i32
  }
  func.func @transform_4(%arg0: i32) -> (i32, i32) {
    %c0_i32 = arith.constant 0 : i32
    %c0_i32_0 = arith.constant 0 : i32
    %c0_i32_1 = arith.constant 0 : i32
    return %c0_i32, %c0_i32_0 : i32, i32
  }
  func.func @transform_5(%arg0: i32) -> (i32, i32) {
    %c0_i32 = arith.constant 0 : i32
    %c0_i32_0 = arith.constant 0 : i32
    %c0_i32_1 = arith.constant 0 : i32
    return %c0_i32, %c0_i32_0 : i32, i32
  }
  func.func @transform_6(%arg0: i32) -> (i32, i32) {
    %c0_i32 = arith.constant 0 : i32
    %c0_i32_0 = arith.constant 0 : i32
    %c0_i32_1 = arith.constant 0 : i32
    return %c0_i32, %c0_i32_0 : i32, i32
  }
  func.func @transform_7(%arg0: i32) -> (i32, i32) {
    %c0_i32 = arith.constant 0 : i32
    %c0_i32_0 = arith.constant 0 : i32
    return %c0_i32, %arg0 : i32, i32
  }
}

</mosaic_0001>

<llo_original>
// kernel: tpu_custom_call.1
$region0: #{tpu_custom_call.1}
  #allocation0 [shape = 'u32[]', space=smem, size = 0x4, offset = 0x4, fixed_abs, tag = 'smem constant byte address 0x4 - core index']
  #allocation1 [shape = 'u32[72,128]{1,0:T(1,128)}', space=vmem, size = 0x9000, scoped, tag = 'internal scratch']
  %s0 = inlined_call_operand.vmem [shape: f32[2,128], index: 0, kind: input, shape index: {}]
  %s1 = inlined_call_operand.vmem [shape: f32[32,2], index: 1, kind: input, shape index: {}]
  %s2 = inlined_call_operand.vmem [shape: f32[32,1], index: 2, kind: input, shape index: {}]
  %s3 = inlined_call_operand.vmem [shape: bf16[32,32], index: 3, kind: input, shape index: {}]
  %s4 = inlined_call_operand.vmem [shape: f32[32,1], index: 4, kind: input, shape index: {}]
  %s5 = inlined_call_operand.vmem [shape: bf16[2,32], index: 5, kind: input, shape index: {}]
  %s6 = inlined_call_operand.vmem [shape: f32[2,1], index: 6, kind: input, shape index: {}]
  %s7 = inlined_call_operand.hbm [shape: f32[2,128], index: 7, kind: output, shape index: {}]
  %s8 = sld [smem:[#allocation0]]
  $region38: #{tpu_custom_call.1} parent=0
    _
  %s10 = ssub.s32 1, %s8
  %s11 = scalar_select 0, %s10, %s8
  $region1: #{tpu_custom_call.1} parent=0
    #allocation2 [shape = 'u8[1024]{0}', space=vmem, size = 0x400, scoped, tag = 'output window, operand 0, single buffered']
    #allocation3 [shape = 's32[1]{0}', space=sflag, size = 0x4, scoped, tag = 'scoped memory for tpu_custom_call.1']
    %12 = vsyncpa [#allocation3], 0
    // Predicated region
    $region2: #{tpu_custom_call.1} parent=1 // pred_check
      _
    $region3: #{tpu_custom_call.1} parent=1 // pred_check_branch
      %14 = sbr.rel (0) target = $region5
    $region4: #{tpu_custom_call.1} parent=1 // pred_region
      _
    $region5: #{tpu_custom_call.1} parent=1 // pred_fallthru
      _
    // Predicated region
    $region6: #{tpu_custom_call.1} parent=1 // pred_check
      _
    $region7: #{tpu_custom_call.1} parent=1 // pred_check_branch
      %16 = sbr.rel (0) target = $region9
    $region8: #{tpu_custom_call.1} parent=1 // pred_region
      _
    $region9: #{tpu_custom_call.1} parent=1 // pred_fallthru
      _
    // Predicated region
    $region10: #{tpu_custom_call.1} parent=1 // pred_check
      _
    $region11: #{tpu_custom_call.1} parent=1 // pred_check_branch
      %18 = sbr.rel (0) target = $region13
    $region12: #{tpu_custom_call.1} parent=1 // pred_region
      _
    $region13: #{tpu_custom_call.1} parent=1 // pred_fallthru
      _
    // Predicated region
    $region14: #{tpu_custom_call.1} parent=1 // pred_check
      _
    $region15: #{tpu_custom_call.1} parent=1 // pred_check_branch
      %20 = sbr.rel (0) target = $region17
    $region16: #{tpu_custom_call.1} parent=1 // pred_region
      _
    $region17: #{tpu_custom_call.1} parent=1 // pred_fallthru
      _
    // Predicated region
    $region18: #{tpu_custom_call.1} parent=1 // pred_check
      _
    $region19: #{tpu_custom_call.1} parent=1 // pred_check_branch
      %22 = sbr.rel (0) target = $region21
    $region20: #{tpu_custom_call.1} parent=1 // pred_region
      _
    $region21: #{tpu_custom_call.1} parent=1 // pred_fallthru
      _
    // Predicated region
    $region22: #{tpu_custom_call.1} parent=1 // pred_check
      _
    $region23: #{tpu_custom_call.1} parent=1 // pred_check_branch
      %24 = sbr.rel (0) target = $region25
    $region24: #{tpu_custom_call.1} parent=1 // pred_region
      _
    $region25: #{tpu_custom_call.1} parent=1 // pred_fallthru
      _
    // Predicated region
    $region26: #{tpu_custom_call.1} parent=1 // pred_check
      _
    $region27: #{tpu_custom_call.1} parent=1 // pred_check_branch
      %26 = sbr.rel (0) target = $region29
    $region28: #{tpu_custom_call.1} parent=1 // pred_region
      _
    $region29: #{tpu_custom_call.1} parent=1 // pred_fallthru
      _
    %v28 = vld [vmem:[%s0] sm:$0x3]
    %v29 = vld [vmem:[%s1] sm:$0xff]
    %v30 = vld [vmem:[%s1 + $0x8] sm:$0xff]
    %v31 = vld [vmem:[%s1 + $0x10] sm:$0xff]
    %v32 = vld [vmem:[%s1 + $0x18] sm:$0xff]
    %34 = vset.pattern.permute.xlu0 0
    %35 = vperm.xlu0 %34, %v29
    %v36 = vpop.permute.xlu0 %35
    %39 = vset.pattern.permute.xlu0 0
    %40 = vperm.xlu0 %39, %v30
    %v41 = vpop.permute.xlu0 %40
    %44 = vset.pattern.permute.xlu0 0
    %45 = vperm.xlu0 %44, %v31
    %v46 = vpop.permute.xlu0 %45
    %49 = vset.pattern.permute.xlu0 0
    %50 = vperm.xlu0 %49, %v32
    %v51 = vpop.permute.xlu0 %50
    %v53 = vperm.slane %v28, 0
    %v54 = vmul.f32 %v36, %v53
    %v55 = vmul.f32 %v41, %v53
    %v56 = vmul.f32 %v46, %v53
    %v57 = vmul.f32 %v51, %v53
    %58 = vset.pattern.permute.xlu0 1
    %59 = vperm.xlu0 %58, %v29
    %v60 = vpop.permute.xlu0 %59
    %62 = vset.pattern.permute.xlu0 1
    %63 = vperm.xlu0 %62, %v30
    %v64 = vpop.permute.xlu0 %63
    %66 = vset.pattern.permute.xlu0 1
    %67 = vperm.xlu0 %66, %v31
    %v68 = vpop.permute.xlu0 %67
    %70 = vset.pattern.permute.xlu0 1
    %71 = vperm.xlu0 %70, %v32
    %v72 = vpop.permute.xlu0 %71
    %v74 = vperm.slane %v28, 1
    %v75 = vmul.f32 %v60, %v74
    %v76 = vmul.f32 %v64, %v74
    %v77 = vmul.f32 %v68, %v74
    %v78 = vmul.f32 %v72, %v74
    %v79 = vadd.f32 %v54, %v75
    %v80 = vadd.f32 %v55, %v76
    %v81 = vadd.f32 %v56, %v77
    %v82 = vadd.f32 %v57, %v78
    %v83 = vld [vmem:[%s2] sm:$0xff]
    %v84 = vld [vmem:[%s2 + $0x8] sm:$0xff]
    %v85 = vld [vmem:[%s2 + $0x10] sm:$0xff]
    %v86 = vld [vmem:[%s2 + $0x18] sm:$0xff]
    %88 = vset.pattern.permute.xlu0 0
    %89 = vperm.xlu0 %88, %v83
    %v90 = vpop.permute.xlu0 %89
    %93 = vset.pattern.permute.xlu0 0
    %94 = vperm.xlu0 %93, %v84
    %v95 = vpop.permute.xlu0 %94
    %98 = vset.pattern.permute.xlu0 0
    %99 = vperm.xlu0 %98, %v85
    %v100 = vpop.permute.xlu0 %99
    %103 = vset.pattern.permute.xlu0 0
    %104 = vperm.xlu0 %103, %v86
    %v105 = vpop.permute.xlu0 %104
    %v107 = vadd.f32 %v79, %v90
    %v108 = vadd.f32 %v80, %v95
    %v109 = vadd.f32 %v81, %v100
    %v110 = vadd.f32 %v82, %v105
    %v111 = vmul.f32 %v107, 0.01
    %v112 = vmul.f32 %v108, 0.01
    %v113 = vmul.f32 %v109, 0.01
    %v114 = vmul.f32 %v110, 0.01
    %v115 = vmax.f32 %v107, %v111
    %v116 = vmax.f32 %v108, %v112
    %v117 = vmax.f32 %v109, %v113
    %v118 = vmax.f32 %v110, %v114
    %v119 = vld [vmem:[%s3] sm:$0xf]
    %v120 = vld [vmem:[%s3 + $0x4] sm:$0xf]
    %v121 = vld [vmem:[%s3 + $0x8] sm:$0xf]
    %v122 = vld [vmem:[%s3 + $0xc] sm:$0xf]
    %v123 = vpack.c.bf16 %v116, %v115
    %v124 = vpack.c.bf16 %v118, %v117
    %v125 = vld [vmem:[%s4] sm:$0xff]
    %v126 = vld [vmem:[%s4 + $0x8] sm:$0xff]
    %v127 = vld [vmem:[%s4 + $0x10] sm:$0xff]
    %v128 = vld [vmem:[%s4 + $0x18] sm:$0xff]
    %130 = vset.pattern.permute.xlu0 0
    %131 = vperm.xlu0 %130, %v125
    %v132 = vpop.permute.xlu0 %131
    %135 = vset.pattern.permute.xlu0 0
    %136 = vperm.xlu0 %135, %v126
    %v137 = vpop.permute.xlu0 %136
    %140 = vset.pattern.permute.xlu0 0
    %141 = vperm.xlu0 %140, %v127
    %v142 = vpop.permute.xlu0 %141
    %145 = vset.pattern.permute.xlu0 0
    %146 = vperm.xlu0 %145, %v128
    %v147 = vpop.permute.xlu0 %146
    %v153 = vunpack.c.l.b16 %v119
    %v154 = vunpack.c.l.b16 %v120
    %v155 = vunpack.c.l.b16 %v121
    %v156 = vunpack.c.l.b16 %v122
    %v157 = vpack.c.b16 %v154, %v153
    %v158 = vpack.c.b16 %v156, %v155
    %vm159 = vcmask 261120
    %v161 = vsel %vm159, %v157, 0
    %v164 = vsel %vm159, %v158, 0
    %166 = vmatpush.bf16.msra.mxu0 0
    %167 = vmatpush.bf16.msra.mxu0 0
    %168 = vmatpush.bf16.msra.mxu0 0
    %169 = vmatpush.bf16.msra.mxu0 0
    %170 = vmatpush.bf16.msra.mxu0 0
    %171 = vmatpush.bf16.msra.mxu0 0
    %172 = vmatpush.bf16.msra.mxu0 %v124
    %173 = vmatpush.bf16.msra.mxu0 %v123
    %174 = vmatmul.bf16.gmra.mxu0 %v161
    %v175 = vpop.f32.mrf.mxu0
    %v176 = vadd.f32 %v132, %v175
    %v177 = vpop.f32.mrf.mxu0
    %v178 = vadd.f32 %v137, %v177
    %179 = vmatmul.bf16.gmra.mxu0 %v164
    %v180 = vpop.f32.mrf.mxu0
    %v181 = vadd.f32 %v142, %v180
    %v182 = vpop.f32.mrf.mxu0
    %v183 = vadd.f32 %v147, %v182
    %184 = vdwg.mxu0
    %v185 = vmul.f32 %v176, 0.01
    %v186 = vmul.f32 %v178, 0.01
    %v187 = vmul.f32 %v181, 0.01
    %v188 = vmul.f32 %v183, 0.01
    %v189 = vmax.f32 %v176, %v185
    %v190 = vmax.f32 %v178, %v186
    %v191 = vmax.f32 %v181, %v187
    %v192 = vmax.f32 %v183, %v188
    %v193 = vld [vmem:[%s5] sm:$0x1]
    %v194 = vpack.c.bf16 %v190, %v189
    %v195 = vpack.c.bf16 %v192, %v191
    %v196 = vld [vmem:[%s6] sm:$0x3]
    %198 = vset.pattern.permute.xlu0 0
    %199 = vperm.xlu0 %198, %v196
    %v200 = vpop.permute.xlu0 %199
    %v203 = vsel %vm159, %v193, 0
    %205 = vmatpush.bf16.msra.mxu0 0
    %206 = vmatpush.bf16.msra.mxu0 0
    %207 = vmatpush.bf16.msra.mxu0 0
    %208 = vmatpush.bf16.msra.mxu0 0
    %209 = vmatpush.bf16.msra.mxu0 0
    %210 = vmatpush.bf16.msra.mxu0 0
    %211 = vmatpush.bf16.msra.mxu0 %v195
    %212 = vmatpush.bf16.msra.mxu0 %v194
    %213 = vmatmul.bf16.gmra.mxu0 %v203
    %v214 = vpop.f32.mrf.mxu0
    %v215 = vadd.f32 %v200, %v214
    %v216 = vpop.f32.mrf.mxu0
    %217 = vdwg.mxu0
    %v218 = vadd.f32 %v215, %v28
    %219 = vst [vmem:[#allocation2] sm:$0x3] %v218
    // Predicated region
    $region30: #{tpu_custom_call.1} parent=1 // pred_check
      _
    $region31: #{tpu_custom_call.1} parent=1 // pred_check_branch
      %221 = sbr.rel (0) target = $region33
    $region32: #{tpu_custom_call.1} parent=1 // pred_region
      %223 = vsyncadd [#allocation3], 0
      %s225 = sshll.u32 [#allocation2], 4
      %s226 = int_to_ptr.vmem [resolvable:$true] %s225
      %s227 = sshll.u32 %s7, 4
      %s228 = int_to_ptr.hbm [resolvable:$true] %s227
      %230 = dma.vmem_to_hbm [thread:$0]  %s226, 32, %s228, [#allocation3]
    $region33: #{tpu_custom_call.1} parent=1 // pred_fallthru
      _
    // Predicated region
    $region34: #{tpu_custom_call.1} parent=1 // pred_check
      _
    $region35: #{tpu_custom_call.1} parent=1 // pred_check_branch
      %232 = sbr.rel (0) target = $region37
    $region36: #{tpu_custom_call.1} parent=1 // pred_region
      %234 = dma.done [#allocation3], 32
    $region37: #{tpu_custom_call.1} parent=1 // pred_fallthru
      _
    %235 = vsyncpa [#allocation3], 1

</llo_original>
